<compile_context>
chip_gen: v6e
topology: v6e:2x2x1
jax: 0.10.0
libtpu: 0.0.40
codegen_flags: <defaults>
</compile_context>

<pallas_src>
import math

import jax
import jax.numpy as jnp
from jax.experimental import pallas as pl
from jax.experimental.pallas import tpu as pltpu

_LANES = 128
_SUB = 8          # f32 sublane tile height
_TR_MAX = 1024    # rows per grid step: 1024*128*4B = 512 KiB per input block
_NCORES = 2       # leading "parallel" axis -> both TensorCores on v7x


def _round_up(a, b):
    return (a + b - 1) // b * b


def _dice_bce_kernel(x_ref, t_ref, acc_ref):
    """Accumulate [sum_bce, sum(p*t), sum(p), sum(t)] into a (1,4,8,128) slab."""

    @pl.when(pl.program_id(1) == 0)
    def _():
        acc_ref[...] = jnp.zeros_like(acc_ref)

    x = x_ref[...].astype(jnp.float32)
    t = t_ref[...].astype(jnp.float32)

    # Single exp per element, shared between BCE-with-logits and sigmoid.
    e = jnp.exp(-jnp.abs(x))                      # exp(-|x|) in (0, 1]
    bce = jnp.maximum(x, 0.0) - x * t + jnp.log1p(e)
    s = 1.0 / (1.0 + e)                           # sigmoid(|x|)
    p = jnp.where(x >= 0.0, s, e * s)             # sigmoid(x)

    tr = x.shape[0]

    def part(v):
        # (tr, 128) -> (8, 128) partial sum: pure vreg adds, no XLU, no SMEM.
        return jnp.sum(v.reshape(tr // _SUB, _SUB, _LANES), axis=0)

    acc_ref[0, 0] += part(bce)
    acc_ref[0, 1] += part(p * t)
    acc_ref[0, 2] += part(p)
    acc_ref[0, 3] += part(t)


def _dice_bce_sums(x2d, t2d, tr, tiles_per_core):
    rows, _ = x2d.shape
    n_padded = rows * _LANES
    T = tiles_per_core

    acc = pl.pallas_call(
        _dice_bce_kernel,
        out_shape=jax.ShapeDtypeStruct((_NCORES, 4, _SUB, _LANES), jnp.float32),
        grid_spec=pl.GridSpec(
            grid=(_NCORES, T),
            in_specs=[
                pl.BlockSpec((tr, _LANES), lambda c, i: (c * T + i, 0)),
                pl.BlockSpec((tr, _LANES), lambda c, i: (c * T + i, 0)),
            ],
            out_specs=pl.BlockSpec((1, 4, _SUB, _LANES),
                                   lambda c, i: (c, 0, 0, 0)),
        ),
        compiler_params=pltpu.CompilerParams(
            dimension_semantics=("parallel", "arbitrary")),
        cost_estimate=pl.CostEstimate(
            flops=12 * n_padded,
            transcendentals=3 * n_padded,
            bytes_accessed=n_padded * (x2d.dtype.itemsize + t2d.dtype.itemsize)
            + _NCORES * 4 * _SUB * _LANES * 4),
    )(x2d, t2d)

    # Tiny one-shot epilogue reduction over (2, 4, 8, 128) -> (4,).
    return jnp.sum(acc, axis=(0, 2, 3))


@jax.jit
def dice_bce_loss(inputs, targets):
    """Pallas TPU implementation of DiceBCELoss.forward(inputs, targets)."""
    assert inputs.shape == targets.shape
    n = inputs.size                                  # static under jit
    smooth = jnp.float32(1e-06)

    # ---- static tiling arithmetic ------------------------------------------
    rows = -(-n // _LANES)                                        # cdiv
    tr = min(_TR_MAX, _round_up(-(-rows // _NCORES), _SUB))
    tiles_per_core = -(-rows // (_NCORES * tr))
    rows_padded = _NCORES * tiles_per_core * tr
    n_padded = rows_padded * _LANES
    n_pad = n_padded - n

    def prep(a):
        flat = a.reshape(-1)                         # native dtype, no astype
        if n_pad:                                    # copies only if needed
            flat = jnp.pad(flat, (0, n_pad))
        return flat.reshape(rows_padded, _LANES)

    sums = _dice_bce_sums(prep(inputs), prep(targets), tr, tiles_per_core)
    sum_bce, inter, sum_p, sum_t = sums[0], sums[1], sums[2], sums[3]

    # Analytic correction for the zero padding: each padded element (x=0,t=0)
    # contributes ln(2) to sum_bce and 0.5 to sum_p, nothing to inter / sum_t.
    if n_pad:
        sum_bce = sum_bce - jnp.float32(n_pad * math.log(2.0))
        sum_p = sum_p - jnp.float32(0.5 * n_pad)

    bce_loss = sum_bce / jnp.float32(n)
    dice_loss = 1.0 - (2.0 * inter + smooth) / (sum_p + sum_t + smooth)

    # PyTorch: `if targets.sum() == 0: return bce_loss`
    return jnp.where(sum_t == 0.0, bce_loss, bce_loss + dice_loss)


def _reference(inputs, targets):
    x = inputs.astype(jnp.float32)
    t = targets.astype(jnp.float32)
    bce = jnp.mean(jnp.maximum(x, 0.0) - x * t + jnp.log1p(jnp.exp(-jnp.abs(x))))
    p = jax.nn.sigmoid(x).reshape(-1)
    tf = t.reshape(-1)
    smooth = 1e-06
    inter = jnp.sum(p * tf)
    dice = 1.0 - (2.0 * inter + smooth) / (jnp.sum(p) + jnp.sum(tf) + smooth)
    return jnp.where(jnp.sum(tf) == 0.0, bce, bce + dice)


if __name__ == "__main__":
    key = jax.random.PRNGKey(0)
    k1, k2, k3, k4 = jax.random.split(key, 4)

    # NCHW, same convention as the PyTorch module (tiles evenly -> no pad copy).
    inputs = jax.random.normal(k1, (2, 4, 16, 16), dtype=jnp.float32)
    targets = (jax.random.uniform(k2, (2, 4, 16, 16)) > 0.5).astype(jnp.float32)

    out = dice_bce_loss(inputs, targets)
    jax.block_until_ready(out)
    ref = _reference(inputs, targets)
    assert jnp.allclose(out, ref, rtol=1e-4, atol=1e-5), (out, ref)

    # targets.sum() == 0 early-return branch.
    out0 = dice_bce_loss(inputs, jnp.zeros_like(targets))
    jax.block_until_ready(out0)
    ref0 = _reference(inputs, jnp.zeros_like(targets))
    assert jnp.allclose(out0, ref0, rtol=1e-4, atol=1e-5), (out0, ref0)

    # Odd shape -> exercises the pad + analytic-correction path.
    inputs2 = jax.random.normal(k3, (2, 3, 7, 11), dtype=jnp.float32)
    targets2 = (jax.random.uniform(k4, (2, 3, 7, 11)) > 0.5).astype(jnp.float32)
    out2 = dice_bce_loss(inputs2, targets2)
    jax.block_until_ready(out2)
    ref2 = _reference(inputs2, targets2)
    assert jnp.allclose(out2, ref2, rtol=1e-4, atol=1e-5), (out2, ref2)

    print("KERNEL_OK")
</pallas_src>

<mosaic_0001>
module attributes {stable_mosaic.version = 11 : i64} {
  func.func @_dice_bce_kernel(%arg0: i32, %arg1: i32, %arg2: memref<8x128xf32, #tpu.memory_space<vmem>>, %arg3: memref<8x128xf32, #tpu.memory_space<vmem>>, %arg4: memref<1x4x8x128xf32, #tpu.memory_space<vmem>>) attributes {dimension_semantics = [#tpu.dimension_semantics<parallel>, #tpu.dimension_semantics<arbitrary>], iteration_bounds = array<i64: 2, 1>, scalar_prefetch = 0 : i64, scratch_operands = 0 : i64, tpu.core_type = #tpu.core_type<tc>, window_params = [{transform_indices = @transform_0, window_bounds = array<i64: 8, 128>}, {transform_indices = @transform_1, window_bounds = array<i64: 8, 128>}, {transform_indices = @transform_2, window_bounds = array<i64: 1, 4, 8, 128>}]} {
    %c0_i32 = arith.constant 0 : i32
    %0 = arith.cmpi eq, %arg1, %c0_i32 : i32
    %1 = arith.extui %0 : i1 to i32
    %c0_i32_0 = arith.constant 0 : i32
    %2 = arith.cmpi ne, %1, %c0_i32_0 : i32
    scf.if %2 {
      %cst_41 = arith.constant 0.000000e+00 : f32
      %56 = vector.broadcast %cst_41 : f32 to vector<1x4x8x128xf32>
      %c0_42 = arith.constant 0 : index
      %c0_43 = arith.constant 0 : index
      %c0_44 = arith.constant 0 : index
      %c0_45 = arith.constant 0 : index
      %57 = vector.load %arg4[%c0_42, %c0_43, %c0_44, %c0_45] : memref<1x4x8x128xf32, #tpu.memory_space<vmem>>, vector<1x4x8x128xf32>
      tpu.vector_store %arg4[%c0_42, %c0_43, %c0_44, %c0_45], %56 {strides = array<i32>} : memref<1x4x8x128xf32, #tpu.memory_space<vmem>>, vector<1x4x8x128xf32>,
    } else {
    }
    %c0 = arith.constant 0 : index
    %c0_1 = arith.constant 0 : index
    %3 = vector.load %arg2[%c0, %c0_1] : memref<8x128xf32, #tpu.memory_space<vmem>>, vector<8x128xf32>
    %c0_2 = arith.constant 0 : index
    %c0_3 = arith.constant 0 : index
    %4 = vector.load %arg3[%c0_2, %c0_3] : memref<8x128xf32, #tpu.memory_space<vmem>>, vector<8x128xf32>
    %5 = math.absf %3 : vector<8x128xf32>
    %cst = arith.constant 0.000000e+00 : f32
    %6 = vector.broadcast %cst : f32 to vector<8x128xf32>
    %7 = arith.subf %6, %5 : vector<8x128xf32>
    %8 = math.exp %7 : vector<8x128xf32>
    %cst_4 = arith.constant 0.000000e+00 : f32
    %9 = vector.broadcast %cst_4 : f32 to vector<8x128xf32>
    %10 = arith.maximumf %3, %9 : vector<8x128xf32>
    %11 = arith.mulf %3, %4 : vector<8x128xf32>
    %12 = arith.subf %10, %11 : vector<8x128xf32>
    %13 = math.log1p %8 : vector<8x128xf32>
    %14 = arith.addf %12, %13 : vector<8x128xf32>
    %cst_5 = arith.constant 1.000000e+00 : f32
    %15 = vector.broadcast %cst_5 : f32 to vector<8x128xf32>
    %16 = arith.addf %15, %8 : vector<8x128xf32>
    %cst_6 = arith.constant 1.000000e+00 : f32
    %17 = vector.broadcast %cst_6 : f32 to vector<8x128xf32>
    %18 = arith.divf %17, %16 : vector<8x128xf32>
    %cst_7 = arith.constant 0.000000e+00 : f32
    %19 = vector.broadcast %cst_7 : f32 to vector<8x128xf32>
    %20 = arith.cmpf oge, %3, %19 : vector<8x128xf32>
    %21 = arith.mulf %8, %18 : vector<8x128xf32>
    %22 = arith.select %20, %18, %21 : vector<8x128xi1>, vector<8x128xf32>
    %c0_8 = arith.constant 0 : index
    %c0_9 = arith.constant 0 : index
    %c0_10 = arith.constant 0 : index
    %c0_11 = arith.constant 0 : index
    %23 = vector.load %arg4[%c0_8, %c0_9, %c0_10, %c0_11] : memref<1x4x8x128xf32, #tpu.memory_space<vmem>>, vector<1x1x8x128xf32>
    %24 = vector.shape_cast %23 : vector<1x1x8x128xf32> to vector<8x128xf32>
    %25 = vector.shape_cast %14 : vector<8x128xf32> to vector<1x8x128xf32>
    %cst_12 = arith.constant dense<0.000000e+00> : vector<8x128xf32>
    %26 = vector.multi_reduction <add>, %25, %cst_12 [0] : vector<1x8x128xf32> to vector<8x128xf32>
    %27 = arith.addf %24, %26 : vector<8x128xf32>
    %c0_13 = arith.constant 0 : index
    %c0_14 = arith.constant 0 : index
    %c0_15 = arith.constant 0 : index
    %c0_16 = arith.constant 0 : index
    %28 = vector.load %arg4[%c0_13, %c0_14, %c0_15, %c0_16] : memref<1x4x8x128xf32, #tpu.memory_space<vmem>>, vector<1x1x8x128xf32>
    %29 = vector.shape_cast %28 : vector<1x1x8x128xf32> to vector<8x128xf32>
    %30 = vector.shape_cast %27 : vector<8x128xf32> to vector<1x1x8x128xf32>
    tpu.vector_store %arg4[%c0_13, %c0_14, %c0_15, %c0_16], %30 {strides = array<i32>} : memref<1x4x8x128xf32, #tpu.memory_space<vmem>>, vector<1x1x8x128xf32>,
    %c0_17 = arith.constant 0 : index
    %c1 = arith.constant 1 : index
    %c0_18 = arith.constant 0 : index
    %c0_19 = arith.constant 0 : index
    %31 = vector.load %arg4[%c0_17, %c1, %c0_18, %c0_19] : memref<1x4x8x128xf32, #tpu.memory_space<vmem>>, vector<1x1x8x128xf32>
    %32 = vector.shape_cast %31 : vector<1x1x8x128xf32> to vector<8x128xf32>
    %33 = arith.mulf %22, %4 : vector<8x128xf32>
    %34 = vector.shape_cast %33 : vector<8x128xf32> to vector<1x8x128xf32>
    %cst_20 = arith.constant dense<0.000000e+00> : vector<8x128xf32>
    %35 = vector.multi_reduction <add>, %34, %cst_20 [0] : vector<1x8x128xf32> to vector<8x128xf32>
    %36 = arith.addf %32, %35 : vector<8x128xf32>
    %c0_21 = arith.constant 0 : index
    %c1_22 = arith.constant 1 : index
    %c0_23 = arith.constant 0 : index
    %c0_24 = arith.constant 0 : index
    %37 = vector.load %arg4[%c0_21, %c1_22, %c0_23, %c0_24] : memref<1x4x8x128xf32, #tpu.memory_space<vmem>>, vector<1x1x8x128xf32>
    %38 = vector.shape_cast %37 : vector<1x1x8x128xf32> to vector<8x128xf32>
    %39 = vector.shape_cast %36 : vector<8x128xf32> to vector<1x1x8x128xf32>
    tpu.vector_store %arg4[%c0_21, %c1_22, %c0_23, %c0_24], %39 {strides = array<i32>} : memref<1x4x8x128xf32, #tpu.memory_space<vmem>>, vector<1x1x8x128xf32>,
    %c0_25 = arith.constant 0 : index
    %c2 = arith.constant 2 : index
    %c0_26 = arith.constant 0 : index
    %c0_27 = arith.constant 0 : index
    %40 = vector.load %arg4[%c0_25, %c2, %c0_26, %c0_27] : memref<1x4x8x128xf32, #tpu.memory_space<vmem>>, vector<1x1x8x128xf32>
    %41 = vector.shape_cast %40 : vector<1x1x8x128xf32> to vector<8x128xf32>
    %42 = vector.shape_cast %22 : vector<8x128xf32> to vector<1x8x128xf32>
    %cst_28 = arith.constant dense<0.000000e+00> : vector<8x128xf32>
    %43 = vector.multi_reduction <add>, %42, %cst_28 [0] : vector<1x8x128xf32> to vector<8x128xf32>
    %44 = arith.addf %41, %43 : vector<8x128xf32>
    %c0_29 = arith.constant 0 : index
    %c2_30 = arith.constant 2 : index
    %c0_31 = arith.constant 0 : index
    %c0_32 = arith.constant 0 : index
    %45 = vector.load %arg4[%c0_29, %c2_30, %c0_31, %c0_32] : memref<1x4x8x128xf32, #tpu.memory_space<vmem>>, vector<1x1x8x128xf32>
    %46 = vector.shape_cast %45 : vector<1x1x8x128xf32> to vector<8x128xf32>
    %47 = vector.shape_cast %44 : vector<8x128xf32> to vector<1x1x8x128xf32>
    tpu.vector_store %arg4[%c0_29, %c2_30, %c0_31, %c0_32], %47 {strides = array<i32>} : memref<1x4x8x128xf32, #tpu.memory_space<vmem>>, vector<1x1x8x128xf32>,
    %c0_33 = arith.constant 0 : index
    %c3 = arith.constant 3 : index
    %c0_34 = arith.constant 0 : index
    %c0_35 = arith.constant 0 : index
    %48 = vector.load %arg4[%c0_33, %c3, %c0_34, %c0_35] : memref<1x4x8x128xf32, #tpu.memory_space<vmem>>, vector<1x1x8x128xf32>
    %49 = vector.shape_cast %48 : vector<1x1x8x128xf32> to vector<8x128xf32>
    %50 = vector.shape_cast %4 : vector<8x128xf32> to vector<1x8x128xf32>
    %cst_36 = arith.constant dense<0.000000e+00> : vector<8x128xf32>
    %51 = vector.multi_reduction <add>, %50, %cst_36 [0] : vector<1x8x128xf32> to vector<8x128xf32>
    %52 = arith.addf %49, %51 : vector<8x128xf32>
    %c0_37 = arith.constant 0 : index
    %c3_38 = arith.constant 3 : index
    %c0_39 = arith.constant 0 : index
    %c0_40 = arith.constant 0 : index
    %53 = vector.load %arg4[%c0_37, %c3_38, %c0_39, %c0_40] : memref<1x4x8x128xf32, #tpu.memory_space<vmem>>, vector<1x1x8x128xf32>
    %54 = vector.shape_cast %53 : vector<1x1x8x128xf32> to vector<8x128xf32>
    %55 = vector.shape_cast %52 : vector<8x128xf32> to vector<1x1x8x128xf32>
    tpu.vector_store %arg4[%c0_37, %c3_38, %c0_39, %c0_40], %55 {strides = array<i32>} : memref<1x4x8x128xf32, #tpu.memory_space<vmem>>, vector<1x1x8x128xf32>,
    return
  }
  func.func @transform_0(%arg0: i32, %arg1: i32) -> (i32, i32) {
    %c1_i32 = arith.constant 1 : i32
    %0 = arith.muli %arg0, %c1_i32 : i32
    %1 = arith.addi %0, %arg1 : i32
    %c0_i32 = arith.constant 0 : i32
    %c0_i32_0 = arith.constant 0 : i32
    return %1, %c0_i32 : i32, i32
  }
  func.func @transform_1(%arg0: i32, %arg1: i32) -> (i32, i32) {
    %c1_i32 = arith.constant 1 : i32
    %0 = arith.muli %arg0, %c1_i32 : i32
    %1 = arith.addi %0, %arg1 : i32
    %c0_i32 = arith.constant 0 : i32
    %c0_i32_0 = arith.constant 0 : i32
    return %1, %c0_i32 : i32, i32
  }
  func.func @transform_2(%arg0: i32, %arg1: i32) -> (i32, i32, i32, i32) {
    %c0_i32 = arith.constant 0 : i32
    %c0_i32_0 = arith.constant 0 : i32
    %c0_i32_1 = arith.constant 0 : i32
    %c0_i32_2 = arith.constant 0 : i32
    return %arg0, %c0_i32, %c0_i32_0, %c0_i32_1 : i32, i32, i32, i32
  }
}

</mosaic_0001>

<llo_original>
// kernel: dice_bce_loss.1
$region0: #{dice_bce_loss.1}
  #allocation0 [shape = 'u32[]', space=smem, size = 0x4, offset = 0x4, fixed_abs, tag = 'smem constant byte address 0x4 - core index']
  #allocation1 [shape = 'u32[144,128]{1,0:T(1,128)}', space=vmem, size = 0x12000, scoped, tag = 'internal scratch']
  %s0 = inlined_call_operand.vmem [shape: f32[16,128], index: 0, kind: input, shape index: {}]
  %s1 = inlined_call_operand.vmem [shape: f32[16,128], index: 1, kind: input, shape index: {}]
  %s2 = inlined_call_operand.vmem [shape: f32[2,4,8,128], index: 2, kind: output, shape index: {}]
  %s3 = sld [smem:[#allocation0]]
  $region45: #{dice_bce_loss.1} parent=0
    _
  %s5 = ssub.s32 1, %s3
  %s6 = scalar_select 0, %s5, %s3
  loop: start=0, step=1, limit=4
  $region2: #{dice_bce_loss.1} parent=0 // loop_pre_header
    _
  $region3: #{dice_bce_loss.1} parent=0 // loop_header
    %s8 = sphi 0, %s12
    %p9 = scmp.ge.s32.totalorder %s8, 4
    %s15 = sphi 0, %s27
    %s16 = sphi 0, %s23
    %s17 = sphi 0, %s15
    %s18 = sphi 0, %s16
    %s19 = sphi 0, %s17
    %s20 = sphi 0, %s18
    %s32 = sphi 0, %s34
    %s35 = sphi 0, %s32
    %s36 = sphi 0, %s35
    %s52 = sphi 0, %s36
    %s60 = sphi 0, %s62
    %s63 = sphi 0, %s60
    %s64 = sphi 0, %s63
    %s80 = sphi 0, %s64
    %s86 = sphi 0, %s88
    %s89 = sphi 0, %s86
    %s90 = sphi 0, %s89
    %s106 = sphi 0, %s90
  $region4: #{dice_bce_loss.1} parent=0 // loop_header_branch
    %11 = sbr.rel (%p9) target = $region8
  $region5: #{dice_bce_loss.1} parent=0 // loop_body
    %s13 = ssub.s32 %s8, 1
    %s14 = ssub.s32 %s8, 2
    %s21 = sadd.s32 1, %s16
    %p22 = scmp.ge.s32.totalorder %s21, 1
    %s23 = scalar_select %p22, 0, %s21
    %s24 = sadd.s32 1, %s15
    %s25 = scalar_select %p22, %s24, %s15
    %p26 = scmp.ge.s32.totalorder %s25, 2
    %s27 = scalar_select %p26, 0, %s25
    %s28 = sadd.s32 %s15, %s16
    %s29 = sadd.s32 %s27, %s23
    %s30 = ssub.s32 %s28, %s29
    %p31 = scmp.eq.s32.totalorder %s30, 0
    %s33 = sadd.s32 %s32, 1
    %s34 = scalar_select %p31, %s32, %s33
    %p37 = pneg %p31
    %p38 = scmp.eq.s32.totalorder %s8, 1
    %p39 = por %p37, %p38
    %p40 = scmp.ne.s32.totalorder %s32, %s35
    %p41 = scmp.eq.s32.totalorder %s8, 0
    %p42 = por %p40, %p41
    %p43 = scmp.ne.s32.totalorder %s32, %s35
    %p44 = scmp.eq.s32.totalorder %s13, 1
    %p45 = por %p43, %p44
    %p46 = scmp.ne.s32.totalorder %s35, %s36
    %p47 = scmp.eq.s32.totalorder %s13, 0
    %p48 = por %p46, %p47
    %p49 = scmp.ne.s32.totalorder %s35, %s36
    %p50 = scmp.eq.s32.totalorder %s14, 1
    %p51 = por %p49, %p50
    %p53 = scmp.ne.s32.totalorder %s36, %s52
    %p54 = scmp.eq.s32.totalorder %s14, 0
    %p55 = por %p53, %p54
    %s56 = sadd.s32 %s15, %s16
    %s57 = sadd.s32 %s27, %s23
    %s58 = ssub.s32 %s56, %s57
    %p59 = scmp.eq.s32.totalorder %s58, 0
    %s61 = sadd.s32 %s60, 1
    %s62 = scalar_select %p59, %s60, %s61
    %p65 = pneg %p59
    %p66 = scmp.eq.s32.totalorder %s8, 1
    %p67 = por %p65, %p66
    %p68 = scmp.ne.s32.totalorder %s60, %s63
    %p69 = scmp.eq.s32.totalorder %s8, 0
    %p70 = por %p68, %p69
    %p71 = scmp.ne.s32.totalorder %s60, %s63
    %p72 = scmp.eq.s32.totalorder %s13, 1
    %p73 = por %p71, %p72
    %p74 = scmp.ne.s32.totalorder %s63, %s64
    %p75 = scmp.eq.s32.totalorder %s13, 0
    %p76 = por %p74, %p75
    %p77 = scmp.ne.s32.totalorder %s63, %s64
    %p78 = scmp.eq.s32.totalorder %s14, 1
    %p79 = por %p77, %p78
    %p81 = scmp.ne.s32.totalorder %s64, %s80
    %p82 = scmp.eq.s32.totalorder %s14, 0
    %p83 = por %p81, %p82
    %s84 = ssub.s32 %s15, %s27
    %p85 = scmp.eq.s32.totalorder %s84, 0
    %s87 = sadd.s32 %s86, 1
    %s88 = scalar_select %p85, %s86, %s87
    %p91 = pneg %p85
    %p92 = scmp.eq.s32.totalorder %s8, 1
    %p93 = por %p91, %p92
    %p94 = scmp.ne.s32.totalorder %s86, %s89
    %p95 = scmp.eq.s32.totalorder %s8, 0
    %p96 = por %p94, %p95
    %p97 = scmp.ne.s32.totalorder %s86, %s89
    %p98 = scmp.eq.s32.totalorder %s13, 1
    %p99 = por %p97, %p98
    %p100 = scmp.ne.s32.totalorder %s89, %s90
    %p101 = scmp.eq.s32.totalorder %s13, 0
    %p102 = por %p100, %p101
    %p103 = scmp.ne.s32.totalorder %s89, %s90
    %p104 = scmp.eq.s32.totalorder %s14, 1
    %p105 = por %p103, %p104
    %p107 = scmp.ne.s32.totalorder %s90, %s106
    %p108 = scmp.eq.s32.totalorder %s14, 0
    %p109 = por %p107, %p108
    %p110 = scmp.le.s32.totalorder 1, %s8
    %p111 = scmp.lt.s32.totalorder %s8, 3
    %p112 = pnand %p110, %p111
    %p113 = pneg %p112
    // Predicated region
    $region9: #{dice_bce_loss.1} parent=5 // pred_check
      _
    $region10: #{dice_bce_loss.1} parent=5 // pred_check_branch
      %115 = sbr.rel (%p112) target = $region12
    $region11: #{dice_bce_loss.1} parent=5 // pred_region
      %s116 = ssub.s32 %s8, 1
    $region12: #{dice_bce_loss.1} parent=5 // pred_fallthru
      _
    %p117 = scmp.lt.s32.totalorder %s8, 2
    // Predicated region
    $region13: #{dice_bce_loss.1} parent=5 // pred_check
      %p118 = pneg %p117
    $region14: #{dice_bce_loss.1} parent=5 // pred_check_branch
      %120 = sbr.rel (%p118) target = $region16
    $region15: #{dice_bce_loss.1} parent=5 // pred_region
      // Predicated region
      $region17: #{dice_bce_loss.1} parent=15 // pred_check
        %p121 = pneg %p42
      $region18: #{dice_bce_loss.1} parent=15 // pred_check_branch
        %123 = sbr.rel (%p121) target = $region20
      $region19: #{dice_bce_loss.1} parent=15 // pred_region
        %s124 = sadd.s32 %s15, %s16
        %p125 = scmp.lt.s32.totalorder %s124, 1
        %s126 = scalar_select %p125, %s124, 1
        %s127 = smul.addr %s126, 8
        %s128 = scalar_lea.vmem %s0, %s127
        %s129 = sadd.s32 %s15, %s16
      $region20: #{dice_bce_loss.1} parent=15 // pred_fallthru
        _
      // Predicated region
      $region21: #{dice_bce_loss.1} parent=15 // pred_check
        %p130 = pneg %p70
      $region22: #{dice_bce_loss.1} parent=15 // pred_check_branch
        %132 = sbr.rel (%p130) target = $region24
      $region23: #{dice_bce_loss.1} parent=15 // pred_region
        %s133 = sadd.s32 %s15, %s16
        %p134 = scmp.lt.s32.totalorder %s133, 1
        %s135 = scalar_select %p134, %s133, 1
        %s136 = smul.addr %s135, 8
        %s137 = scalar_lea.vmem %s1, %s136
        %s138 = sadd.s32 %s15, %s16
      $region24: #{dice_bce_loss.1} parent=15 // pred_fallthru
        _
    $region16: #{dice_bce_loss.1} parent=5 // pred_fallthru
      _
    %p139 = scmp.le.s32.totalorder 1, %s8
    %p140 = scmp.lt.s32.totalorder %s8, 3
    %p141 = pnand %p139, %p140
    %p142 = pneg %p141
    // Predicated region
    $region25: #{dice_bce_loss.1} parent=5 // pred_check
      _
    $region26: #{dice_bce_loss.1} parent=5 // pred_check_branch
      %144 = sbr.rel (%p141) target = $region28
    $region27: #{dice_bce_loss.1} parent=5 // pred_region
      %s145 = ssub.s32 %s8, 1
      %s146 = sadd.s32 %s17, %s18
      %p147 = scmp.lt.s32.totalorder %s146, 1
      %s148 = scalar_select %p147, %s146, 1
      %s149 = smul.addr %s148, 8
      %s150 = scalar_lea.vmem %s0, %s149
      %p151 = pneg %p48
      %p152 = pneg %p45
      %s153 = sadd.s32 %s17, %s18
      %p154 = scmp.lt.s32.totalorder %s153, 1
      %s155 = scalar_select %p154, %s153, 1
      %s156 = smul.addr %s155, 8
      %s157 = scalar_lea.vmem %s1, %s156
      %p158 = pneg %p76
      %p159 = pneg %p73
      %p160 = pneg %p102
      %p161 = pneg %p99
      %p162 = scmp.lt.s32.totalorder %s17, 1
      %s163 = scalar_select %p162, %s17, 1
      %s164 = smul.addr %s163, 4
      %s165 = smul.addr %s164, 8
      %s166 = scalar_lea.vmem %s2, %s165
      %s167 = sadd.s32 %s17, %s18
      %p168 = scmp.lt.s32.totalorder %s167, 1
      %s169 = scalar_select %p168, %s167, 1
      %s170 = smul.addr %s169, 8
      %s171 = scalar_lea.vmem %s0, %s170
      %s172 = sadd.s32 %s17, %s18
      %s173 = sadd.s32 %s17, %s18
      %p174 = scmp.lt.s32.totalorder %s173, 1
      %s175 = scalar_select %p174, %s173, 1
      %s176 = smul.addr %s175, 8
      %s177 = scalar_lea.vmem %s1, %s176
      %s178 = sadd.s32 %s17, %s18
      %p179 = scmp.lt.s32.totalorder %s17, 1
      %s180 = scalar_select %p179, %s17, 1
      %s181 = smul.addr %s180, 4
      %s182 = smul.addr %s181, 8
      %s183 = scalar_lea.vmem %s2, %s182
      %p184 = scmp.eq.s32.totalorder %s18, 0
      // Predicated region
      $region29: #{dice_bce_loss.1} parent=27 // pred_check
        %p185 = pneg %p184
      $region30: #{dice_bce_loss.1} parent=27 // pred_check_branch
        %187 = sbr.rel (%p185) target = $region32
      $region31: #{dice_bce_loss.1} parent=27 // pred_region
        %188 = vst [vmem:[%s183] sm:$0xff] 0.0
        %189 = vst [vmem:[%s183 + $0x8] sm:$0xff] 0.0
        %190 = vst [vmem:[%s183 + $0x10] sm:$0xff] 0.0
        %191 = vst [vmem:[%s183 + $0x18] sm:$0xff] 0.0
      $region32: #{dice_bce_loss.1} parent=27 // pred_fallthru
        _
      %v192 = vld [vmem:[%s171] sm:$0xff]
      %v193 = vld [vmem:[%s177] sm:$0xff]
      %v194 = vand.u32 2147483647, %v192
      %v195 = vsub.f32 0.0, %v194
      %v196 = vmul.f32 %v195, 1.442695
      %v197 = vpow.pop %v196
      %v198 = vmax.f32 %v192, 0.0
      %v199 = vmul.f32 %v192, %v193
      %v200 = vsub.f32 %v198, %v199
      %v201 = vadd.f32 %v197, 1.0
      %v202 = vlog2.pop %v201
      %v203 = vmul.f32 %v202, 0.6931472
      %v204 = vmul.f32 -0.5, %v197
      %v205 = vadd.f32 %v204, 1.0
      %v206 = vmul.f32 %v205, %v197
      %v207 = vand.u32 2147483647, %v197
      %vm208 = vcmp.lt.f32.partialorder %v207, 0.0004427343
      %v209 = vsel %vm208, %v206, %v203
      %v210 = vadd.f32 %v200, %v209
      %v211 = vadd.f32 %v197, 1.0
      %v212 = vrcp.pop %v211
      %v213 = vmul.f32 1.0, %v212
      %vm214 = vcmp.ge.f32.partialorder %v192, 0.0
      %v215 = vmul.f32 %v197, %v213
      %v216 = vsel %vm214, %v213, %v215
      %v217 = vld [vmem:[%s183] sm:$0xff]
      %v218 = vadd.f32 %v210, 0.0
      %v219 = vadd.f32 %v217, %v218
      %220 = vst [vmem:[%s183] sm:$0xff] %v219
      %s221 = scalar_lea.vmem %s183, 8
      %v222 = vld [vmem:[%s221] sm:$0xff]
      %v223 = vmul.f32 %v216, %v193
      %v224 = vadd.f32 %v223, 0.0
      %v225 = vadd.f32 %v222, %v224
      %226 = vst [vmem:[%s221] sm:$0xff] %v225
      %s227 = scalar_lea.vmem %s183, 16
      %v228 = vld [vmem:[%s227] sm:$0xff]
      %v229 = vadd.f32 %v216, 0.0
      %v230 = vadd.f32 %v228, %v229
      %231 = vst [vmem:[%s227] sm:$0xff] %v230
      %s232 = scalar_lea.vmem %s183, 24
      %v233 = vld [vmem:[%s232] sm:$0xff]
      %v234 = vadd.f32 %v193, 0.0
      %v235 = vadd.f32 %v233, %v234
      %236 = vst [vmem:[%s232] sm:$0xff] %v235
      %p237 = scmp.lt.s32.totalorder %s17, 1
      %s238 = scalar_select %p237, %s17, 1
      %s239 = smul.addr %s238, 4
      %s240 = smul.addr %s239, 8
      %s241 = scalar_lea.vmem %s2, %s240
      // Predicated region
      $region33: #{dice_bce_loss.1} parent=27 // pred_check
        %p242 = pneg %p99
      $region34: #{dice_bce_loss.1} parent=27 // pred_check_branch
        %244 = sbr.rel (%p242) target = $region36
      $region35: #{dice_bce_loss.1} parent=27 // pred_region
        _
      $region36: #{dice_bce_loss.1} parent=27 // pred_fallthru
        _
    $region28: #{dice_bce_loss.1} parent=5 // pred_fallthru
      _
    %p245 = scmp.le.s32.totalorder 2, %s8
    // Predicated region
    $region37: #{dice_bce_loss.1} parent=5 // pred_check
      %p246 = pneg %p245
    $region38: #{dice_bce_loss.1} parent=5 // pred_check_branch
      %248 = sbr.rel (%p246) target = $region40
    $region39: #{dice_bce_loss.1} parent=5 // pred_region
      %s249 = ssub.s32 %s8, 2
      // Predicated region
      $region41: #{dice_bce_loss.1} parent=39 // pred_check
        %p250 = pneg %p105
      $region42: #{dice_bce_loss.1} parent=39 // pred_check_branch
        %252 = sbr.rel (%p250) target = $region44
      $region43: #{dice_bce_loss.1} parent=39 // pred_region
        %p253 = scmp.lt.s32.totalorder %s19, 1
        %s254 = scalar_select %p253, %s19, 1
        %s255 = smul.addr %s254, 4
        %s256 = smul.addr %s255, 8
        %s257 = scalar_lea.vmem %s2, %s256
      $region44: #{dice_bce_loss.1} parent=39 // pred_fallthru
        _
    $region40: #{dice_bce_loss.1} parent=5 // pred_fallthru
      _
  $region6: #{dice_bce_loss.1} parent=0 // loop_footer
    %s12 = sadd.s32 1, %s8
  $region7: #{dice_bce_loss.1} parent=0 // loop_footer_branch
    %7 = sbr.rel target = $region3
  $region8: #{dice_bce_loss.1} parent=0 // loop_exit
    _

</llo_original>
